<compile_context>
chip_gen: v5e
topology: v5e:2x2
jax: 0.10.0
libtpu: 0.0.40
codegen_flags: <defaults>
</compile_context>

<pallas_src>
import math
from functools import partial

import jax
import jax.numpy as jnp
from jax.experimental import pallas as pl
from jax.experimental.pallas import tpu as pltpu


def _round_up(x, m):
    return (x + m - 1) // m * m


# ----------------------------------------------------------------------------
# Kernels
# ----------------------------------------------------------------------------
def _linear_kernel_direct(x_ref, w_ref, b_ref, o_ref):
    """f32 output: accumulate directly into the K-resident output block."""
    k = pl.program_id(2)

    @pl.when(k == 0)
    def _():
        # Bias folded into the accumulator init -> added exactly once.
        o_ref[...] = jnp.broadcast_to(b_ref[...].astype(o_ref.dtype), o_ref.shape)

    # Contract last dims of x (tm, tk) and W (tn, tk): y += x @ W.T on the MXU,
    # with W in its native (OUT, IN) layout (no transpose / XLU traffic).
    o_ref[...] += jax.lax.dot_general(
        x_ref[...],
        w_ref[...],
        dimension_numbers=(((1,), (1,)), ((), ())),
        preferred_element_type=jnp.float32,
    )


def _linear_kernel_scratch(x_ref, w_ref, b_ref, o_ref, acc_ref):
    """Non-f32 output: f32 VMEM accumulator, cast once in the finalize branch."""
    k = pl.program_id(2)

    @pl.when(k == 0)
    def _():
        acc_ref[...] = jnp.broadcast_to(
            b_ref[...].astype(jnp.float32), acc_ref.shape
        )

    acc_ref[...] += jax.lax.dot_general(
        x_ref[...],
        w_ref[...],
        dimension_numbers=(((1,), (1,)), ((), ())),
        preferred_element_type=jnp.float32,
    )

    @pl.when(k == pl.num_programs(2) - 1)
    def _():
        o_ref[...] = acc_ref[...].astype(o_ref.dtype)


# ----------------------------------------------------------------------------
# Tile selection
# ----------------------------------------------------------------------------
_VMEM_LIMIT_BYTES = 48 << 20   # safe on v5e/v6e; <= v7x 64 MiB physical with headroom
_VMEM_BUDGET_BYTES = 40 << 20  # target for tile footprint (double-buffered)


def _choose_tiles(m_hint, N, K, in_itemsize, out_itemsize, tm, tn, tk):
    m_al = _round_up(max(m_hint, 1), 8)
    n_al = _round_up(N, 128)
    k_al = _round_up(K, 128)

    tm = min(tm, m_al)

    # Small-batch / GEMV-like: the weight stream dominates, so widen N/K tiles
    # to stream W once per sweep with large contiguous DMAs.
    if m_al <= 256:
        tn = max(tn, 1024)
        tk = max(tk, 2048)

    tn = min(tn, n_al)
    tk = min(tk, k_al)

    # v7x megacore: guarantee >= 2 blocks on a "parallel" axis when possible so
    # both TensorCores get work.
    if m_al <= tm and n_al <= tn and n_al >= 256:
        tn = _round_up(n_al // 2, 128)

    # Keep the double-buffered VMEM footprint under budget: shrink tk, then tn.
    def footprint(tk_, tn_):
        ins = 2 * (tm * tk_ + tn_ * tk_ + tn_) * in_itemsize
        outs = 2 * tm * tn_ * out_itemsize + tm * tn_ * 4  # out bufs + f32 acc
        return ins + outs

    while footprint(tk, tn) > _VMEM_BUDGET_BYTES and tk > 512:
        tk = max(512, _round_up(tk // 2, 128))
    while footprint(tk, tn) > _VMEM_BUDGET_BYTES and tn > 256:
        tn = max(256, _round_up(tn // 2, 128))

    # If a tile covers the whole (possibly unaligned) dim, use the full dim so
    # no padding is needed (block_shape == full array dim is always legal).
    if tn >= n_al:
        tn = N
    if tk >= k_al:
        tk = K
    return tm, tn, tk


# ----------------------------------------------------------------------------
# Wrapper: parameters are prepared ONCE, only x is handled per call.
# ----------------------------------------------------------------------------
def make_out_grad_only_linear(
    weight,
    bias=None,
    *,
    tm=256,
    tn=512,
    tk=1024,
    compute_dtype=None,   # e.g. jnp.bfloat16 for MXU-native math (f32 accumulation)
    w_buffers=2,          # >2 -> deeper pipelining of the W stream (sweep 2 vs 3)
    batch_hint=1024,      # expected batch size, only used for tile selection
):
    """Returns apply(x) computing x @ weight.T + bias with a Pallas TPU kernel.

    weight : (out_features, in_features)   (PyTorch nn.Linear layout)
    bias   : (out_features,) or None
    """
    N, K = weight.shape
    if bias is None:
        bias = jnp.zeros((N,), weight.dtype)

    in_dtype = compute_dtype if compute_dtype is not None else weight.dtype
    in_itemsize = jnp.dtype(in_dtype).itemsize

    tm, tn, tk = _choose_tiles(
        batch_hint, N, K, in_itemsize, 4, tm, tn, tk
    )
    N_p = _round_up(N, tn)
    K_p = _round_up(K, tk)

    # Pad / cast the static parameters exactly once (hoisted out of the hot path).
    w_p = weight if compute_dtype is None else weight.astype(compute_dtype)
    if N_p != N or K_p != K:
        w_p = jnp.pad(w_p, ((0, N_p - N), (0, K_p - K)))
    b_p = bias if N_p == N else jnp.pad(bias, (0, N_p - N))
    b_p = b_p.reshape(1, N_p)

    if w_buffers != 2:
        w_spec = pl.BlockSpec(
            (tn, tk), lambda i, j, k: (j, k), pipeline_mode=pl.Buffered(w_buffers)
        )
    else:
        w_spec = pl.BlockSpec((tn, tk), lambda i, j, k: (j, k))

    def apply(x):
        M, K_x = x.shape
        assert K_x == K, "in_features mismatch"

        out_dtype = x.dtype
        out_itemsize = jnp.dtype(out_dtype).itemsize

        tm_c = min(tm, _round_up(M, 8))
        M_p = _round_up(M, tm_c)

        x_c = x if compute_dtype is None else x.astype(compute_dtype)
        if M_p != M or K_p != K:
            x_c = jnp.pad(x_c, ((0, M_p - M), (0, K_p - K)))

        grid = (M_p // tm_c, N_p // tn, K_p // tk)

        # f32 outputs accumulate directly into the (K-resident) output block.
        direct = out_dtype == jnp.float32
        kernel = _linear_kernel_direct if direct else _linear_kernel_scratch
        scratch = [] if direct else [pltpu.VMEM((tm_c, tn), jnp.float32)]

        cost = pl.CostEstimate(
            flops=2 * M_p * N_p * K_p,
            transcendentals=0,
            bytes_accessed=int(
                x_c.size * in_itemsize * (N_p // tn)          # x re-read per N block
                + w_p.size * in_itemsize * (M_p // tm_c)      # W re-read per M block
                + b_p.size * jnp.dtype(b_p.dtype).itemsize
                + M_p * N_p * out_itemsize
            ),
        )

        y_p = pl.pallas_call(
            kernel,
            out_shape=jax.ShapeDtypeStruct((M_p, N_p), out_dtype),
            grid_spec=pltpu.PrefetchScalarGridSpec(
                num_scalar_prefetch=0,
                grid=grid,
                in_specs=[
                    pl.BlockSpec((tm_c, tk), lambda i, j, k: (i, k)),  # x tile
                    w_spec,                                            # W tile (OUT, IN)
                    pl.BlockSpec((1, tn), lambda i, j, k: (0, j)),     # bias tile
                ],
                out_specs=pl.BlockSpec((tm_c, tn), lambda i, j, k: (i, j)),
                scratch_shapes=scratch,
            ),
            compiler_params=pltpu.CompilerParams(
                dimension_semantics=("parallel", "parallel", "arbitrary"),
                vmem_limit_bytes=_VMEM_LIMIT_BYTES,
            ),
            cost_estimate=cost,
        )(x_c, w_p, b_p)

        if M_p == M and N_p == N:
            return y_p
        return y_p[:M, :N]

    return apply


def out_grad_only_linear(x, weight, bias=None, **kwargs):
    """One-shot convenience wrapper. For training loops, build the closure once
    with make_out_grad_only_linear(...) so weight/bias preparation is hoisted."""
    kwargs.setdefault("batch_hint", x.shape[0])
    return make_out_grad_only_linear(weight, bias, **kwargs)(x)


def init_params(key, in_features, out_features, dtype=jnp.float32):
    """Deterministic init mirroring nn.Linear.reset_parameters:
    kaiming_uniform_(a=sqrt(5)) -> uniform(-1/sqrt(fan_in), +1/sqrt(fan_in))
    for both weight and bias."""
    kw, kb = jax.random.split(key)
    bound = 1.0 / math.sqrt(in_features)
    weight = jax.random.uniform(
        kw, (out_features, in_features), dtype, minval=-bound, maxval=bound
    )
    bias = jax.random.uniform(kb, (out_features,), dtype, minval=-bound, maxval=bound)
    return weight, bias


if __name__ == "__main__":
    in_features = 64
    out_features = 64
    batch = 8

    key = jax.random.PRNGKey(0)
    kx, kp = jax.random.split(key)

    weight, bias = init_params(kp, in_features, out_features)
    x = jax.random.normal(kx, (batch, in_features), jnp.float32)

    layer = make_out_grad_only_linear(weight, bias, batch_hint=batch)
    y = jax.block_until_ready(layer(x))

    # sanity check against plain JAX reference
    y_ref = x @ weight.T + bias
    assert y.shape == (batch, out_features)
    assert jnp.allclose(y, y_ref, atol=1e-5, rtol=1e-5)

    # convenience one-shot wrapper path
    y2 = jax.block_until_ready(out_grad_only_linear(x, weight, bias))
    assert jnp.allclose(y2, y_ref, atol=1e-5, rtol=1e-5)

    print("KERNEL_OK")
</pallas_src>

<mosaic_0001>
module attributes {stable_mosaic.version = 11 : i64} {
  func.func @_linear_kernel_direct(%arg0: i32, %arg1: i32, %arg2: i32, %arg3: memref<8x64xf32, #tpu.memory_space<vmem>>, %arg4: memref<64x64xf32, #tpu.memory_space<vmem>>, %arg5: memref<1x64xf32, #tpu.memory_space<vmem>>, %arg6: memref<8x64xf32, #tpu.memory_space<vmem>>) attributes {dimension_semantics = [#tpu.dimension_semantics<parallel>, #tpu.dimension_semantics<parallel>, #tpu.dimension_semantics<arbitrary>], iteration_bounds = array<i64: 1, 1, 1>, scalar_prefetch = 0 : i64, scratch_operands = 0 : i64, tpu.core_type = #tpu.core_type<tc>, window_params = [{transform_indices = @transform_0, window_bounds = array<i64: 8, 64>}, {transform_indices = @transform_1, window_bounds = array<i64: 64, 64>}, {transform_indices = @transform_2, window_bounds = array<i64: 1, 64>}, {transform_indices = @transform_3, window_bounds = array<i64: 8, 64>}]} {
    %c0_i32 = arith.constant 0 : i32
    %0 = arith.cmpi eq, %arg2, %c0_i32 : i32
    %1 = arith.extui %0 : i1 to i32
    %c0_i32_0 = arith.constant 0 : i32
    %2 = arith.cmpi ne, %1, %c0_i32_0 : i32
    scf.if %2 {
      %c0_8 = arith.constant 0 : index
      %c0_9 = arith.constant 0 : index
      %9 = vector.load %arg5[%c0_8, %c0_9] : memref<1x64xf32, #tpu.memory_space<vmem>>, vector<1x64xf32>
      %10 = vector.shape_cast %9 : vector<1x64xf32> to vector<1x64xf32>
      %11 = vector.broadcast %10 : vector<1x64xf32> to vector<8x64xf32>
      %c0_10 = arith.constant 0 : index
      %c0_11 = arith.constant 0 : index
      %12 = vector.load %arg6[%c0_10, %c0_11] : memref<8x64xf32, #tpu.memory_space<vmem>>, vector<8x64xf32>
      tpu.vector_store %arg6[%c0_10, %c0_11], %11 {strides = array<i32>} : memref<8x64xf32, #tpu.memory_space<vmem>>, vector<8x64xf32>,
    } else {
    }
    %c0 = arith.constant 0 : index
    %c0_1 = arith.constant 0 : index
    %3 = vector.load %arg6[%c0, %c0_1] : memref<8x64xf32, #tpu.memory_space<vmem>>, vector<8x64xf32>
    %c0_2 = arith.constant 0 : index
    %c0_3 = arith.constant 0 : index
    %4 = vector.load %arg3[%c0_2, %c0_3] : memref<8x64xf32, #tpu.memory_space<vmem>>, vector<8x64xf32>
    %c0_4 = arith.constant 0 : index
    %c0_5 = arith.constant 0 : index
    %5 = vector.load %arg4[%c0_4, %c0_5] : memref<64x64xf32, #tpu.memory_space<vmem>>, vector<64x64xf32>
    %cst = arith.constant dense<0.000000e+00> : vector<8x64xf32>
    %6 = tpu.matmul %4, %5, %cst {dimension_numbers = #tpu.dot_dimension_numbers<[1], [1], [0], [0], [0, 0, 1, 0], [], []>} : vector<8x64xf32>, vector<64x64xf32>, vector<8x64xf32> -> vector<8x64xf32>
    %7 = arith.addf %3, %6 : vector<8x64xf32>
    %c0_6 = arith.constant 0 : index
    %c0_7 = arith.constant 0 : index
    %8 = vector.load %arg6[%c0_6, %c0_7] : memref<8x64xf32, #tpu.memory_space<vmem>>, vector<8x64xf32>
    tpu.vector_store %arg6[%c0_6, %c0_7], %7 {strides = array<i32>} : memref<8x64xf32, #tpu.memory_space<vmem>>, vector<8x64xf32>,
    return
  }
  func.func @transform_0(%arg0: i32, %arg1: i32, %arg2: i32) -> (i32, i32) {
    %c0_i32 = arith.constant 0 : i32
    return %arg0, %arg2 : i32, i32
  }
  func.func @transform_1(%arg0: i32, %arg1: i32, %arg2: i32) -> (i32, i32) {
    %c0_i32 = arith.constant 0 : i32
    return %arg1, %arg2 : i32, i32
  }
  func.func @transform_2(%arg0: i32, %arg1: i32, %arg2: i32) -> (i32, i32) {
    %c0_i32 = arith.constant 0 : i32
    %c0_i32_0 = arith.constant 0 : i32
    return %c0_i32, %arg1 : i32, i32
  }
  func.func @transform_3(%arg0: i32, %arg1: i32, %arg2: i32) -> (i32, i32) {
    %c0_i32 = arith.constant 0 : i32
    return %arg0, %arg1 : i32, i32
  }
}

</mosaic_0001>

<llo_original>
// kernel: tpu_custom_call.1
$region0: #{tpu_custom_call.1}
  #allocation0 [shape = 'u32[]', space=smem, size = 0x4, offset = 0x4, fixed_abs, tag = 'smem constant byte address 0x4 - core index']
  #allocation1 [shape = 'u32[72,128]{1,0:T(1,128)}', space=vmem, size = 0x9000, scoped, tag = 'internal scratch']
  %s0 = inlined_call_operand.hbm [shape: f32[8,64], index: 0, kind: input, shape index: {}]
  %s1 = inlined_call_operand.hbm [shape: f32[64,64], index: 1, kind: input, shape index: {}]
  %s2 = inlined_call_operand.vmem [shape: f32[1,64], index: 2, kind: input, shape index: {}]
  %s3 = inlined_call_operand.hbm [shape: f32[8,64], index: 3, kind: output, shape index: {}]
  %s4 = sld [smem:[#allocation0]]
  $region34: #{tpu_custom_call.1} parent=0
    _
  %s6 = ssub.s32 1, %s4
  %s7 = scalar_select 0, %s6, %s4
  $region1: #{tpu_custom_call.1} parent=0
    #allocation2 [shape = 'u8[4096]{0}', space=vmem, size = 0x1000, scoped, tag = 'input window, operand 0, single buffered']
    #allocation3 [shape = 's32[1]{0}', space=sflag, size = 0x4, scoped, tag = 'scoped memory for tpu_custom_call.1']
    #allocation4 [shape = 's32[1]{0}', space=sflag, size = 0x4, scoped, tag = 'scoped memory for tpu_custom_call.1']
    #allocation5 [shape = 'u8[32768]{0}', space=vmem, size = 0x8000, scoped, tag = 'input window, operand 1, single buffered']
    #allocation6 [shape = 's32[1]{0}', space=sflag, size = 0x4, scoped, tag = 'scoped memory for tpu_custom_call.1']
    #allocation7 [shape = 'u8[4096]{0}', space=vmem, size = 0x1000, scoped, tag = 'output window, operand 0, single buffered']
    %8 = vsyncpa [#allocation3], 0
    %9 = vsyncpa [#allocation6], 0
    %10 = vsyncpa [#allocation4], 0
    // Predicated region
    $region2: #{tpu_custom_call.1} parent=1 // pred_check
      _
    $region3: #{tpu_custom_call.1} parent=1 // pred_check_branch
      %12 = sbr.rel (0) target = $region5
    $region4: #{tpu_custom_call.1} parent=1 // pred_region
      %14 = vsyncadd [#allocation3], 0
      %s16 = sshll.u32 %s0, 4
      %s17 = int_to_ptr.hbm [resolvable:$true] %s16
      %s18 = sshll.u32 [#allocation2], 4
      %s19 = int_to_ptr.vmem [resolvable:$true] %s18
      %21 = dma.hbm_to_vmem [thread:$0]  %s17, 128, %s19, [#allocation3]
    $region5: #{tpu_custom_call.1} parent=1 // pred_fallthru
      _
    // Predicated region
    $region6: #{tpu_custom_call.1} parent=1 // pred_check
      _
    $region7: #{tpu_custom_call.1} parent=1 // pred_check_branch
      %23 = sbr.rel (0) target = $region9
    $region8: #{tpu_custom_call.1} parent=1 // pred_region
      %25 = vsyncadd [#allocation6], 0
      %s26 = sshll.u32 %s1, 4
      %s27 = int_to_ptr.hbm [resolvable:$true] %s26
      %s28 = sshll.u32 [#allocation5], 4
      %s29 = int_to_ptr.vmem [resolvable:$true] %s28
      %34 = dma.hbm_to_vmem [thread:$0]  %s27, 1024, %s29, [#allocation6], 128, 128, 8
    $region9: #{tpu_custom_call.1} parent=1 // pred_fallthru
      _
    // Predicated region
    $region10: #{tpu_custom_call.1} parent=1 // pred_check
      _
    $region11: #{tpu_custom_call.1} parent=1 // pred_check_branch
      %36 = sbr.rel (0) target = $region13
    $region12: #{tpu_custom_call.1} parent=1 // pred_region
      _
    $region13: #{tpu_custom_call.1} parent=1 // pred_fallthru
      _
    // Predicated region
    $region14: #{tpu_custom_call.1} parent=1 // pred_check
      _
    $region15: #{tpu_custom_call.1} parent=1 // pred_check_branch
      %38 = sbr.rel (0) target = $region17
    $region16: #{tpu_custom_call.1} parent=1 // pred_region
      %40 = dma.done [#allocation3], 128
    $region17: #{tpu_custom_call.1} parent=1 // pred_fallthru
      _
    // Predicated region
    $region18: #{tpu_custom_call.1} parent=1 // pred_check
      _
    $region19: #{tpu_custom_call.1} parent=1 // pred_check_branch
      %42 = sbr.rel (0) target = $region21
    $region20: #{tpu_custom_call.1} parent=1 // pred_region
      %44 = dma.done [#allocation6], 1024
    $region21: #{tpu_custom_call.1} parent=1 // pred_fallthru
      _
    %p45 = scmp.eq.s32.totalorder 0, 0
    // Predicated region
    $region22: #{tpu_custom_call.1} parent=1 // pred_check
      %p46 = pneg %p45
    $region23: #{tpu_custom_call.1} parent=1 // pred_check_branch
      %48 = sbr.rel (%p46) target = $region25
    $region24: #{tpu_custom_call.1} parent=1 // pred_region
      %v49 = vld [vmem:[%s2] sm:$0x1]
      %v51 = vperm.slane %v49, 0
      %vm53 = vcmask 523264
      %54 = vst.msk [vmem:[#allocation7] sm:$0xff] %vm53, %v51
    $region25: #{tpu_custom_call.1} parent=1 // pred_fallthru
      _
    %v55 = vld [vmem:[#allocation7] sm:$0xff]
    %v56 = vld [vmem:[#allocation2] sm:$0xff]
    %v57 = vld [vmem:[#allocation5] sm:$0xff]
    %v58 = vld [vmem:[#allocation5 + $0x8] sm:$0xff]
    %v59 = vld [vmem:[#allocation5 + $0x10] sm:$0xff]
    %v60 = vld [vmem:[#allocation5 + $0x18] sm:$0xff]
    %v61 = vld [vmem:[#allocation5 + $0x20] sm:$0xff]
    %v62 = vld [vmem:[#allocation5 + $0x28] sm:$0xff]
    %v63 = vld [vmem:[#allocation5 + $0x30] sm:$0xff]
    %v64 = vld [vmem:[#allocation5 + $0x38] sm:$0xff]
    %vm65 = vcmask 523264
    %v67 = vsel %vm65, %v56, 0
    %v70 = vsel %vm65, %v57, 0
    %v73 = vsel %vm65, %v58, 0
    %v76 = vsel %vm65, %v59, 0
    %v79 = vsel %vm65, %v60, 0
    %v82 = vsel %vm65, %v61, 0
    %v85 = vsel %vm65, %v62, 0
    %v88 = vsel %vm65, %v63, 0
    %v91 = vsel %vm65, %v64, 0
    %93 = vmatpush.xpose.msra.mxu0 0.0
    %94 = vmatpush.xpose.msra.mxu0 0.0
    %95 = vmatpush.xpose.msra.mxu0 0.0
    %96 = vmatpush.xpose.msra.mxu0 0.0
    %97 = vmatpush.xpose.msra.mxu0 0.0
    %98 = vmatpush.xpose.msra.mxu0 0.0
    %99 = vmatpush.xpose.msra.mxu0 0.0
    %100 = vmatpush.xpose.msra.mxu0 0.0
    %101 = vmatpush.xpose.msra.mxu0 %v91
    %102 = vmatpush.xpose.msra.mxu0 %v88
    %103 = vmatpush.xpose.msra.mxu0 %v85
    %104 = vmatpush.xpose.msra.mxu0 %v82
    %105 = vmatpush.xpose.msra.mxu0 %v79
    %106 = vmatpush.xpose.msra.mxu0 %v76
    %107 = vmatpush.xpose.msra.mxu0 %v73
    %108 = vmatpush.xpose.msra.mxu0 %v70
    %109 = vmatmul.f32.gmra.mxu0 %v67
    %v110 = vpop.f32.mrf.mxu0
    %v111 = vadd.f32 0.0, %v110
    %112 = vdwg.mxu0
    %v113 = vadd.f32 %v55, %v111
    %114 = vst.msk [vmem:[#allocation7] sm:$0xff] %vm65, %v113
    // Predicated region
    $region26: #{tpu_custom_call.1} parent=1 // pred_check
      _
    $region27: #{tpu_custom_call.1} parent=1 // pred_check_branch
      %116 = sbr.rel (0) target = $region29
    $region28: #{tpu_custom_call.1} parent=1 // pred_region
      %118 = vsyncadd [#allocation4], 0
      %s120 = sshll.u32 [#allocation7], 4
      %s121 = int_to_ptr.vmem [resolvable:$true] %s120
      %s122 = sshll.u32 %s3, 4
      %s123 = int_to_ptr.hbm [resolvable:$true] %s122
      %125 = dma.vmem_to_hbm [thread:$0]  %s121, 128, %s123, [#allocation4]
    $region29: #{tpu_custom_call.1} parent=1 // pred_fallthru
      _
    // Predicated region
    $region30: #{tpu_custom_call.1} parent=1 // pred_check
      _
    $region31: #{tpu_custom_call.1} parent=1 // pred_check_branch
      %127 = sbr.rel (0) target = $region33
    $region32: #{tpu_custom_call.1} parent=1 // pred_region
      %129 = dma.done [#allocation4], 128
    $region33: #{tpu_custom_call.1} parent=1 // pred_fallthru
      _
    %130 = vsyncpa [#allocation3], 1
    %131 = vsyncpa [#allocation6], 1
    %132 = vsyncpa [#allocation4], 1

</llo_original>
